<compile_context>
chip_gen: v7x
topology: tpu7x:2x2x1
jax: 0.10.0
libtpu: 0.0.40
codegen_flags: <defaults>
</compile_context>

<pallas_src>
import jax
import jax.numpy as jnp
from jax.experimental import pallas as pl
from jax.experimental.pallas import tpu as pltpu


def _bignn_kernel(lap_ref, feat_ref, w1_ref, w2_ref, b_ref, out_ref):
    # lap_ref : (TM, N)   row tile of the (dense) laplacian
    # feat_ref: (N, Din)  full feature matrix (needed whole for the propagation)
    # w1_ref  : (Din, Dout), w2_ref: (Din, Dout), b_ref: (1, Dout)  [b = b1 + b2]
    # out_ref : (TM, Dout)
    tm = out_ref.shape[0]
    i = pl.program_id(0)
    row0 = pl.multiple_of(i * tm, 8)

    lap_tile = lap_ref[...]                               # (TM, N)
    feat_all = feat_ref[...]                              # (N, Din)
    feat_tile = feat_ref[pl.ds(row0, tm), :]              # (TM, Din) rows matching this tile

    # x = L @ E   (propagation) — MXU
    x = jnp.dot(lap_tile, feat_all, preferred_element_type=jnp.float32)

    # (E + x) W1  and  (x * E) W2, accumulated into one f32 result — MXU
    part1 = jnp.dot(feat_tile + x, w1_ref[...], preferred_element_type=jnp.float32)
    part2 = jnp.dot(x * feat_tile, w2_ref[...], preferred_element_type=jnp.float32)

    out_ref[...] = (part1 + part2 + b_ref[...]).astype(out_ref.dtype)


def bignn_layer(lap_matrix, eye_matrix, features, w1, b1, w2, b2, *, tm=None):
    """Pallas forward of BiGNNLayer.

    lap_matrix: (N, N) dense laplacian (the PyTorch module uses a sparse matrix;
                Pallas has no sparse formats, so it is materialized dense).
    eye_matrix: (N, N) — unused by the forward pass (kept for API parity).
    features  : (N, Din)
    w1, w2    : (Din, Dout)   (pre-transposed from nn.Linear's [out, in])
    b1, b2    : (Dout,)
    """
    del eye_matrix  # unused in BiGNNLayer.forward, matching the PyTorch code
    N, din = features.shape
    dout = w1.shape[1]

    if tm is None:
        tm = min(N, 256)
    assert N % tm == 0, "N must be divisible by the row tile"
    grid = (N // tm,)

    b = (b1 + b2).reshape(1, dout).astype(jnp.float32)

    in_specs = [
        pl.BlockSpec((tm, N), lambda i: (i, 0)),        # laplacian row tile
        pl.BlockSpec((N, din), lambda i: (0, 0)),       # full features (grid-invariant)
        pl.BlockSpec((din, dout), lambda i: (0, 0)),    # W1
        pl.BlockSpec((din, dout), lambda i: (0, 0)),    # W2
        pl.BlockSpec((1, dout), lambda i: (0, 0)),      # b1 + b2
    ]
    out_spec = pl.BlockSpec((tm, dout), lambda i: (i, 0))

    return pl.pallas_call(
        _bignn_kernel,
        out_shape=jax.ShapeDtypeStruct((N, dout), jnp.float32),
        grid_spec=pltpu.PrefetchScalarGridSpec(
            num_scalar_prefetch=0,
            grid=grid,
            in_specs=in_specs,
            out_specs=out_spec,
        ),
        compiler_params=pltpu.CompilerParams(
            dimension_semantics=("parallel",)),
    )(lap_matrix, features, w1, w2, b)


if __name__ == "__main__":
    key = jax.random.PRNGKey(0)
    k_adj, k_feat, k_w1, k_b1, k_w2, k_b2 = jax.random.split(key, 6)

    N, DIN, DOUT = 256, 64, 64

    # Sparse-ish symmetric normalized adjacency, materialized dense.
    adj = (jax.random.uniform(k_adj, (N, N)) < 0.05).astype(jnp.float32)
    adj = jnp.clip(adj + adj.T, 0.0, 1.0)
    deg = jnp.clip(jnp.sum(adj, axis=-1, keepdims=True), 1.0, None)
    lap = adj / jnp.sqrt(deg) / jnp.sqrt(deg.T)
    eye = jnp.eye(N, dtype=jnp.float32)  # unused by forward (matches PyTorch)

    features = jax.random.normal(k_feat, (N, DIN), jnp.float32)
    w1 = jax.random.normal(k_w1, (DIN, DOUT), jnp.float32) * 0.1
    b1 = jax.random.normal(k_b1, (DOUT,), jnp.float32) * 0.1
    w2 = jax.random.normal(k_w2, (DIN, DOUT), jnp.float32) * 0.1
    b2 = jax.random.normal(k_b2, (DOUT,), jnp.float32) * 0.1

    out = bignn_layer(lap, eye, features, w1, b1, w2, b2)
    jax.block_until_ready(out)

    # Pure-JAX reference of the PyTorch forward.
    x = lap @ features
    ref = (features + x) @ w1 + b1 + (x * features) @ w2 + b2

    assert out.shape == (N, DOUT)
    assert bool(jnp.all(jnp.isfinite(out)))
    assert bool(jnp.allclose(out, ref, atol=1e-4, rtol=1e-4)), "mismatch vs reference"
    print("KERNEL_OK")
</pallas_src>

<mosaic_0001>
module attributes {stable_mosaic.version = 11 : i64} {
  func.func @_bignn_kernel(%arg0: i32, %arg1: memref<256x256xf32, #tpu.memory_space<vmem>>, %arg2: memref<256x64xf32, #tpu.memory_space<vmem>>, %arg3: memref<64x64xf32, #tpu.memory_space<vmem>>, %arg4: memref<64x64xf32, #tpu.memory_space<vmem>>, %arg5: memref<1x64xf32, #tpu.memory_space<vmem>>, %arg6: memref<256x64xf32, #tpu.memory_space<vmem>>) attributes {dimension_semantics = [#tpu.dimension_semantics<parallel>], iteration_bounds = array<i64: 1>, scalar_prefetch = 0 : i64, scratch_operands = 0 : i64, tpu.core_type = #tpu.core_type<tc>, window_params = [{transform_indices = @transform_0, window_bounds = array<i64: 256, 256>}, {pipeline_mode = #tpu.pipeline_mode<synchronous>, transform_indices = @transform_1, window_bounds = array<i64: 256, 64>}, {pipeline_mode = #tpu.pipeline_mode<synchronous>, transform_indices = @transform_2, window_bounds = array<i64: 64, 64>}, {pipeline_mode = #tpu.pipeline_mode<synchronous>, transform_indices = @transform_3, window_bounds = array<i64: 64, 64>}, {pipeline_mode = #tpu.pipeline_mode<synchronous>, transform_indices = @transform_4, window_bounds = array<i64: 1, 64>}, {transform_indices = @transform_5, window_bounds = array<i64: 256, 64>}]} {
    %c256_i32 = arith.constant 256 : i32
    %0 = arith.muli %arg0, %c256_i32 : i32
    %1 = tpu.assume_multiple %0, 8 : i32
    %c0 = arith.constant 0 : index
    %c0_0 = arith.constant 0 : index
    %2 = vector.load %arg1[%c0, %c0_0] : memref<256x256xf32, #tpu.memory_space<vmem>>, vector<256x256xf32>
    %c0_1 = arith.constant 0 : index
    %c0_2 = arith.constant 0 : index
    %3 = vector.load %arg2[%c0_1, %c0_2] : memref<256x64xf32, #tpu.memory_space<vmem>>, vector<256x64xf32>
    %4 = arith.index_cast %1 : i32 to index
    %c0_3 = arith.constant 0 : index
    %5 = vector.load %arg2[%4, %c0_3] : memref<256x64xf32, #tpu.memory_space<vmem>>, vector<256x64xf32>
    %cst = arith.constant dense<0.000000e+00> : vector<256x64xf32>
    %6 = tpu.matmul %2, %3, %cst {dimension_numbers = #tpu.dot_dimension_numbers<[1], [0], [0], [1], [0, 0, 1, 1], [], []>} : vector<256x256xf32>, vector<256x64xf32>, vector<256x64xf32> -> vector<256x64xf32>
    %7 = arith.addf %5, %6 : vector<256x64xf32>
    %c0_4 = arith.constant 0 : index
    %c0_5 = arith.constant 0 : index
    %8 = vector.load %arg3[%c0_4, %c0_5] : memref<64x64xf32, #tpu.memory_space<vmem>>, vector<64x64xf32>
    %cst_6 = arith.constant dense<0.000000e+00> : vector<256x64xf32>
    %9 = tpu.matmul %7, %8, %cst_6 {dimension_numbers = #tpu.dot_dimension_numbers<[1], [0], [0], [1], [0, 0, 1, 1], [], []>} : vector<256x64xf32>, vector<64x64xf32>, vector<256x64xf32> -> vector<256x64xf32>
    %10 = arith.mulf %6, %5 : vector<256x64xf32>
    %c0_7 = arith.constant 0 : index
    %c0_8 = arith.constant 0 : index
    %11 = vector.load %arg4[%c0_7, %c0_8] : memref<64x64xf32, #tpu.memory_space<vmem>>, vector<64x64xf32>
    %cst_9 = arith.constant dense<0.000000e+00> : vector<256x64xf32>
    %12 = tpu.matmul %10, %11, %cst_9 {dimension_numbers = #tpu.dot_dimension_numbers<[1], [0], [0], [1], [0, 0, 1, 1], [], []>} : vector<256x64xf32>, vector<64x64xf32>, vector<256x64xf32> -> vector<256x64xf32>
    %13 = arith.addf %9, %12 : vector<256x64xf32>
    %c0_10 = arith.constant 0 : index
    %c0_11 = arith.constant 0 : index
    %14 = vector.load %arg5[%c0_10, %c0_11] : memref<1x64xf32, #tpu.memory_space<vmem>>, vector<1x64xf32>
    %15 = vector.broadcast %14 : vector<1x64xf32> to vector<256x64xf32>
    %16 = arith.addf %13, %15 : vector<256x64xf32>
    %c0_12 = arith.constant 0 : index
    %c0_13 = arith.constant 0 : index
    %17 = vector.load %arg6[%c0_12, %c0_13] : memref<256x64xf32, #tpu.memory_space<vmem>>, vector<256x64xf32>
    tpu.vector_store %arg6[%c0_12, %c0_13], %16 {strides = array<i32>} : memref<256x64xf32, #tpu.memory_space<vmem>>, vector<256x64xf32>,
    return
  }
  func.func @transform_0(%arg0: i32) -> (i32, i32) {
    %c0_i32 = arith.constant 0 : i32
    %c0_i32_0 = arith.constant 0 : i32
    return %arg0, %c0_i32 : i32, i32
  }
  func.func @transform_1(%arg0: i32) -> (i32, i32) {
    %c0_i32 = arith.constant 0 : i32
    %c0_i32_0 = arith.constant 0 : i32
    %c0_i32_1 = arith.constant 0 : i32
    return %c0_i32, %c0_i32_0 : i32, i32
  }
  func.func @transform_2(%arg0: i32) -> (i32, i32) {
    %c0_i32 = arith.constant 0 : i32
    %c0_i32_0 = arith.constant 0 : i32
    %c0_i32_1 = arith.constant 0 : i32
    return %c0_i32, %c0_i32_0 : i32, i32
  }
  func.func @transform_3(%arg0: i32) -> (i32, i32) {
    %c0_i32 = arith.constant 0 : i32
    %c0_i32_0 = arith.constant 0 : i32
    %c0_i32_1 = arith.constant 0 : i32
    return %c0_i32, %c0_i32_0 : i32, i32
  }
  func.func @transform_4(%arg0: i32) -> (i32, i32) {
    %c0_i32 = arith.constant 0 : i32
    %c0_i32_0 = arith.constant 0 : i32
    %c0_i32_1 = arith.constant 0 : i32
    return %c0_i32, %c0_i32_0 : i32, i32
  }
  func.func @transform_5(%arg0: i32) -> (i32, i32) {
    %c0_i32 = arith.constant 0 : i32
    %c0_i32_0 = arith.constant 0 : i32
    return %arg0, %c0_i32 : i32, i32
  }
}

</mosaic_0001>

<llo_original>
// kernel: tpu_custom_call.1
$region0: #{tpu_custom_call.1}
  #allocation0 [shape = 'u32[]', space=smem, size = 0x4, offset = 0x4, fixed_abs, tag = 'smem constant byte address 0x4 - core index']
  #allocation1 [shape = 'u32[144,128]{1,0:T(1,128)}', space=vmem, size = 0x12000, scoped, tag = 'internal scratch']
  %s0 = inlined_call_operand.hbm [shape: f32[256,256], index: 0, kind: input, shape index: {}]
  %s1 = inlined_call_operand.vmem [shape: f32[256,64], index: 1, kind: input, shape index: {}]
  %s2 = inlined_call_operand.vmem [shape: f32[64,64], index: 2, kind: input, shape index: {}]
  %s3 = inlined_call_operand.vmem [shape: f32[64,64], index: 3, kind: input, shape index: {}]
  %s4 = inlined_call_operand.vmem [shape: f32[1,64], index: 4, kind: input, shape index: {}]
  %s5 = inlined_call_operand.vmem [shape: f32[256,64], index: 5, kind: output, shape index: {}]
  %s6 = sld [smem:[#allocation0]]
  $region34: #{tpu_custom_call.1} parent=0
    _
  %s8 = ssub.s32 1, %s6
  %s9 = scalar_select 0, %s8, %s6
  $region1: #{tpu_custom_call.1} parent=0
    #allocation2 [shape = 'u8[262144]{0}', space=vmem, size = 0x40000, scoped, tag = 'input window, operand 0, single buffered']
    #allocation3 [shape = 's32[1]{0}', space=sflag, size = 0x4, scoped, tag = 'scoped memory for tpu_custom_call.1']
    %10 = vsyncpa [#allocation3], 0
    // Predicated region
    $region2: #{tpu_custom_call.1} parent=1 // pred_check
      _
    $region3: #{tpu_custom_call.1} parent=1 // pred_check_branch
      %12 = sbr.rel (0) target = $region5
    $region4: #{tpu_custom_call.1} parent=1 // pred_region
      %s14 = ssub.s32 8192, 8192
      %15 = vsyncadd [#allocation3], %s14
      %s16 = sshll.u32 [#allocation2], 4
      %s17 = int_to_ptr.vmem [resolvable:$true] %s16
      %22 = dma.hbm_to_vmem [thread:$0]  %s0, 8192, %s17, [#allocation3], 256, 256, 16
    $region5: #{tpu_custom_call.1} parent=1 // pred_fallthru
      _
    // Predicated region
    $region6: #{tpu_custom_call.1} parent=1 // pred_check
      _
    $region7: #{tpu_custom_call.1} parent=1 // pred_check_branch
      %24 = sbr.rel (0) target = $region9
    $region8: #{tpu_custom_call.1} parent=1 // pred_region
      _
    $region9: #{tpu_custom_call.1} parent=1 // pred_fallthru
      _
    // Predicated region
    $region10: #{tpu_custom_call.1} parent=1 // pred_check
      _
    $region11: #{tpu_custom_call.1} parent=1 // pred_check_branch
      %26 = sbr.rel (0) target = $region13
    $region12: #{tpu_custom_call.1} parent=1 // pred_region
      _
    $region13: #{tpu_custom_call.1} parent=1 // pred_fallthru
      _
    // Predicated region
    $region14: #{tpu_custom_call.1} parent=1 // pred_check
      _
    $region15: #{tpu_custom_call.1} parent=1 // pred_check_branch
      %28 = sbr.rel (0) target = $region17
    $region16: #{tpu_custom_call.1} parent=1 // pred_region
      _
    $region17: #{tpu_custom_call.1} parent=1 // pred_fallthru
      _
    // Predicated region
    $region18: #{tpu_custom_call.1} parent=1 // pred_check
      _
    $region19: #{tpu_custom_call.1} parent=1 // pred_check_branch
      %30 = sbr.rel (0) target = $region21
    $region20: #{tpu_custom_call.1} parent=1 // pred_region
      _
    $region21: #{tpu_custom_call.1} parent=1 // pred_fallthru
      _
    // Predicated region
    $region22: #{tpu_custom_call.1} parent=1 // pred_check
      _
    $region23: #{tpu_custom_call.1} parent=1 // pred_check_branch
      %32 = sbr.rel (0) target = $region25
    $region24: #{tpu_custom_call.1} parent=1 // pred_region
      %33 = dma.done [#allocation3], 8192
    $region25: #{tpu_custom_call.1} parent=1 // pred_fallthru
      _
    %s34 = smul.u32 0, 256
    %v35 = vld [vmem:[#allocation2] sm:$0xff]
    %v36 = vld [vmem:[#allocation2 + $0x8] sm:$0xff]
    %v37 = vld [vmem:[#allocation2 + $0x10] sm:$0xff]
    %v38 = vld [vmem:[#allocation2 + $0x18] sm:$0xff]
    %v39 = vld [vmem:[#allocation2 + $0x20] sm:$0xff]
    %v40 = vld [vmem:[#allocation2 + $0x28] sm:$0xff]
    %v41 = vld [vmem:[#allocation2 + $0x30] sm:$0xff]
    %v42 = vld [vmem:[#allocation2 + $0x38] sm:$0xff]
    %v43 = vld [vmem:[#allocation2 + $0x40] sm:$0xff]
    %v44 = vld [vmem:[#allocation2 + $0x48] sm:$0xff]
    %v45 = vld [vmem:[#allocation2 + $0x50] sm:$0xff]
    %v46 = vld [vmem:[#allocation2 + $0x58] sm:$0xff]
    %v47 = vld [vmem:[#allocation2 + $0x60] sm:$0xff]
    %v48 = vld [vmem:[#allocation2 + $0x68] sm:$0xff]
    %v49 = vld [vmem:[#allocation2 + $0x70] sm:$0xff]
    %v50 = vld [vmem:[#allocation2 + $0x78] sm:$0xff]
    %v51 = vld [vmem:[#allocation2 + $0x80] sm:$0xff]
    %v52 = vld [vmem:[#allocation2 + $0x88] sm:$0xff]
    %v53 = vld [vmem:[#allocation2 + $0x90] sm:$0xff]
    %v54 = vld [vmem:[#allocation2 + $0x98] sm:$0xff]
    %v55 = vld [vmem:[#allocation2 + $0xa0] sm:$0xff]
    %v56 = vld [vmem:[#allocation2 + $0xa8] sm:$0xff]
    %v57 = vld [vmem:[#allocation2 + $0xb0] sm:$0xff]
    %v58 = vld [vmem:[#allocation2 + $0xb8] sm:$0xff]
    %v59 = vld [vmem:[#allocation2 + $0xc0] sm:$0xff]
    %v60 = vld [vmem:[#allocation2 + $0xc8] sm:$0xff]
    %v61 = vld [vmem:[#allocation2 + $0xd0] sm:$0xff]
    %v62 = vld [vmem:[#allocation2 + $0xd8] sm:$0xff]
    %v63 = vld [vmem:[#allocation2 + $0xe0] sm:$0xff]
    %v64 = vld [vmem:[#allocation2 + $0xe8] sm:$0xff]
    %v65 = vld [vmem:[#allocation2 + $0xf0] sm:$0xff]
    %v66 = vld [vmem:[#allocation2 + $0xf8] sm:$0xff]
    %v67 = vld [vmem:[#allocation2 + $0x100] sm:$0xff]
    %v68 = vld [vmem:[#allocation2 + $0x108] sm:$0xff]
    %v69 = vld [vmem:[#allocation2 + $0x110] sm:$0xff]
    %v70 = vld [vmem:[#allocation2 + $0x118] sm:$0xff]
    %v71 = vld [vmem:[#allocation2 + $0x120] sm:$0xff]
    %v72 = vld [vmem:[#allocation2 + $0x128] sm:$0xff]
    %v73 = vld [vmem:[#allocation2 + $0x130] sm:$0xff]
    %v74 = vld [vmem:[#allocation2 + $0x138] sm:$0xff]
    %v75 = vld [vmem:[#allocation2 + $0x140] sm:$0xff]
    %v76 = vld [vmem:[#allocation2 + $0x148] sm:$0xff]
    %v77 = vld [vmem:[#allocation2 + $0x150] sm:$0xff]
    %v78 = vld [vmem:[#allocation2 + $0x158] sm:$0xff]
    %v79 = vld [vmem:[#allocation2 + $0x160] sm:$0xff]
    %v80 = vld [vmem:[#allocation2 + $0x168] sm:$0xff]
    %v81 = vld [vmem:[#allocation2 + $0x170] sm:$0xff]
    %v82 = vld [vmem:[#allocation2 + $0x178] sm:$0xff]
    %v83 = vld [vmem:[#allocation2 + $0x180] sm:$0xff]
    %v84 = vld [vmem:[#allocation2 + $0x188] sm:$0xff]
    %v85 = vld [vmem:[#allocation2 + $0x190] sm:$0xff]
    %v86 = vld [vmem:[#allocation2 + $0x198] sm:$0xff]
    %v87 = vld [vmem:[#allocation2 + $0x1a0] sm:$0xff]
    %v88 = vld [vmem:[#allocation2 + $0x1a8] sm:$0xff]
    %v89 = vld [vmem:[#allocation2 + $0x1b0] sm:$0xff]
    %v90 = vld [vmem:[#allocation2 + $0x1b8] sm:$0xff]
    %v91 = vld [vmem:[#allocation2 + $0x1c0] sm:$0xff]
    %v92 = vld [vmem:[#allocation2 + $0x1c8] sm:$0xff]
    %v93 = vld [vmem:[#allocation2 + $0x1d0] sm:$0xff]
    %v94 = vld [vmem:[#allocation2 + $0x1d8] sm:$0xff]
    %v95 = vld [vmem:[#allocation2 + $0x1e0] sm:$0xff]
    %v96 = vld [vmem:[#allocation2 + $0x1e8] sm:$0xff]
    %v97 = vld [vmem:[#allocation2 + $0x1f0] sm:$0xff]
    %v98 = vld [vmem:[#allocation2 + $0x1f8] sm:$0xff]
    %v99 = vld [vmem:[%s1] sm:$0xff]
    %v100 = vld [vmem:[%s1 + $0x8] sm:$0xff]
    %v101 = vld [vmem:[%s1 + $0x10] sm:$0xff]
    %v102 = vld [vmem:[%s1 + $0x18] sm:$0xff]
    %v103 = vld [vmem:[%s1 + $0x20] sm:$0xff]
    %v104 = vld [vmem:[%s1 + $0x28] sm:$0xff]
    %v105 = vld [vmem:[%s1 + $0x30] sm:$0xff]
    %v106 = vld [vmem:[%s1 + $0x38] sm:$0xff]
    %v107 = vld [vmem:[%s1 + $0x40] sm:$0xff]
    %v108 = vld [vmem:[%s1 + $0x48] sm:$0xff]
    %v109 = vld [vmem:[%s1 + $0x50] sm:$0xff]
    %v110 = vld [vmem:[%s1 + $0x58] sm:$0xff]
    %v111 = vld [vmem:[%s1 + $0x60] sm:$0xff]
    %v112 = vld [vmem:[%s1 + $0x68] sm:$0xff]
    %v113 = vld [vmem:[%s1 + $0x70] sm:$0xff]
    %v114 = vld [vmem:[%s1 + $0x78] sm:$0xff]
    %v115 = vld [vmem:[%s1 + $0x80] sm:$0xff]
    %v116 = vld [vmem:[%s1 + $0x88] sm:$0xff]
    %v117 = vld [vmem:[%s1 + $0x90] sm:$0xff]
    %v118 = vld [vmem:[%s1 + $0x98] sm:$0xff]
    %v119 = vld [vmem:[%s1 + $0xa0] sm:$0xff]
    %v120 = vld [vmem:[%s1 + $0xa8] sm:$0xff]
    %v121 = vld [vmem:[%s1 + $0xb0] sm:$0xff]
    %v122 = vld [vmem:[%s1 + $0xb8] sm:$0xff]
    %v123 = vld [vmem:[%s1 + $0xc0] sm:$0xff]
    %v124 = vld [vmem:[%s1 + $0xc8] sm:$0xff]
    %v125 = vld [vmem:[%s1 + $0xd0] sm:$0xff]
    %v126 = vld [vmem:[%s1 + $0xd8] sm:$0xff]
    %v127 = vld [vmem:[%s1 + $0xe0] sm:$0xff]
    %v128 = vld [vmem:[%s1 + $0xe8] sm:$0xff]
    %v129 = vld [vmem:[%s1 + $0xf0] sm:$0xff]
    %v130 = vld [vmem:[%s1 + $0xf8] sm:$0xff]
    %s131 = scalar_lea.vmem %s1, %s34
    %v132 = vld [vmem:[%s131] sm:$0xff]
    %v133 = vld [vmem:[%s131 + $0x8] sm:$0xff]
    %v134 = vld [vmem:[%s131 + $0x10] sm:$0xff]
    %v135 = vld [vmem:[%s131 + $0x18] sm:$0xff]
    %v136 = vld [vmem:[%s131 + $0x20] sm:$0xff]
    %v137 = vld [vmem:[%s131 + $0x28] sm:$0xff]
    %v138 = vld [vmem:[%s131 + $0x30] sm:$0xff]
    %v139 = vld [vmem:[%s131 + $0x38] sm:$0xff]
    %v140 = vld [vmem:[%s131 + $0x40] sm:$0xff]
    %v141 = vld [vmem:[%s131 + $0x48] sm:$0xff]
    %v142 = vld [vmem:[%s131 + $0x50] sm:$0xff]
    %v143 = vld [vmem:[%s131 + $0x58] sm:$0xff]
    %v144 = vld [vmem:[%s131 + $0x60] sm:$0xff]
    %v145 = vld [vmem:[%s131 + $0x68] sm:$0xff]
    %v146 = vld [vmem:[%s131 + $0x70] sm:$0xff]
    %v147 = vld [vmem:[%s131 + $0x78] sm:$0xff]
    %v148 = vld [vmem:[%s131 + $0x80] sm:$0xff]
    %v149 = vld [vmem:[%s131 + $0x88] sm:$0xff]
    %v150 = vld [vmem:[%s131 + $0x90] sm:$0xff]
    %v151 = vld [vmem:[%s131 + $0x98] sm:$0xff]
    %v152 = vld [vmem:[%s131 + $0xa0] sm:$0xff]
    %v153 = vld [vmem:[%s131 + $0xa8] sm:$0xff]
    %v154 = vld [vmem:[%s131 + $0xb0] sm:$0xff]
    %v155 = vld [vmem:[%s131 + $0xb8] sm:$0xff]
    %v156 = vld [vmem:[%s131 + $0xc0] sm:$0xff]
    %v157 = vld [vmem:[%s131 + $0xc8] sm:$0xff]
    %v158 = vld [vmem:[%s131 + $0xd0] sm:$0xff]
    %v159 = vld [vmem:[%s131 + $0xd8] sm:$0xff]
    %v160 = vld [vmem:[%s131 + $0xe0] sm:$0xff]
    %v161 = vld [vmem:[%s131 + $0xe8] sm:$0xff]
    %v162 = vld [vmem:[%s131 + $0xf0] sm:$0xff]
    %v163 = vld [vmem:[%s131 + $0xf8] sm:$0xff]
    %164 = vmatprep.subr.mxu0 0.0
    %165 = vmatpush1.msra.mxu0 %v99
    %166 = vmatprep.subr.mxu0 0.0
    %167 = vmatpush1.msra.mxu0 %v100
    %168 = vmatprep.subr.mxu0 0.0
    %169 = vmatpush1.msra.mxu0 %v101
    %170 = vmatprep.subr.mxu0 0.0
    %171 = vmatpush1.msra.mxu0 %v102
    %172 = vmatprep.subr.mxu0 0.0
    %173 = vmatpush1.msra.mxu0 %v103
    %174 = vmatprep.subr.mxu0 0.0
    %175 = vmatpush1.msra.mxu0 %v104
    %176 = vmatprep.subr.mxu0 0.0
    %177 = vmatpush1.msra.mxu0 %v105
    %178 = vmatprep.subr.mxu0 0.0
    %179 = vmatpush1.msra.mxu0 %v106
    %180 = vmatprep.subr.mxu0 0.0
    %181 = vmatpush1.msra.mxu0 %v107
    %182 = vmatprep.subr.mxu0 0.0
    %183 = vmatpush1.msra.mxu0 %v108
    %184 = vmatprep.subr.mxu0 0.0
    %185 = vmatpush1.msra.mxu0 %v109
    %186 = vmatprep.subr.mxu0 0.0
    %187 = vmatpush1.msra.mxu0 %v110
    %188 = vmatprep.subr.mxu0 0.0
    %189 = vmatpush1.msra.mxu0 %v111
    %190 = vmatprep.subr.mxu0 0.0
    %191 = vmatpush1.msra.mxu0 %v112
    %192 = vmatprep.subr.mxu0 0.0
    %193 = vmatpush1.msra.mxu0 %v113
    %194 = vmatprep.subr.mxu0 0.0
    %195 = vmatpush1.msra.mxu0 %v114
    %196 = vmatprep.subr.mxu0 0.0
    %197 = vmatpush1.msra.mxu0 %v115
    %198 = vmatprep.subr.mxu0 0.0
    %199 = vmatpush1.msra.mxu0 %v116
    %200 = vmatprep.subr.mxu0 0.0
    %201 = vmatpush1.msra.mxu0 %v117
    %202 = vmatprep.subr.mxu0 0.0
    %203 = vmatpush1.msra.mxu0 %v118
    %204 = vmatprep.subr.mxu0 0.0
    %205 = vmatpush1.msra.mxu0 %v119
    %206 = vmatprep.subr.mxu0 0.0
    %207 = vmatpush1.msra.mxu0 %v120
    %208 = vmatprep.subr.mxu0 0.0
    %209 = vmatpush1.msra.mxu0 %v121
    %210 = vmatprep.subr.mxu0 0.0
    %211 = vmatpush1.msra.mxu0 %v122
    %212 = vmatprep.subr.mxu0 0.0
    %213 = vmatpush1.msra.mxu0 %v123
    %214 = vmatprep.subr.mxu0 0.0
    %215 = vmatpush1.msra.mxu0 %v124
    %216 = vmatprep.subr.mxu0 0.0
    %217 = vmatpush1.msra.mxu0 %v125
    %218 = vmatprep.subr.mxu0 0.0
    %219 = vmatpush1.msra.mxu0 %v126
    %220 = vmatprep.subr.mxu0 0.0
    %221 = vmatpush1.msra.mxu0 %v127
    %222 = vmatprep.subr.mxu0 0.0
    %223 = vmatpush1.msra.mxu0 %v128
    %224 = vmatprep.subr.mxu0 0.0
    %225 = vmatpush1.msra.mxu0 %v129
    %226 = vmatprep.subr.mxu0 0.0
    %227 = vmatpush1.msra.mxu0 %v130
    %228 = vmatprep.mubr.f32.mxu0 %v36
    %229 = vmatmul.mubr.f32.gmra.mrb[0].mxu0 %v35
    %v230 = vpop.f32.mrb[0].mxu0
    %v231 = vadd.f32 0.0, %v230
    %v232 = vpop.f32.mrb[0].mxu0
    %233 = vmatprep.mubr.f32.mxu0 %v38
    %234 = vmatmul.mubr.f32.gmra.mrb[0].mxu0 %v37
    %v235 = vpop.f32.mrb[0].mxu0
    %v236 = vadd.f32 0.0, %v235
    %v237 = vpop.f32.mrb[0].mxu0
    %238 = vmatprep.mubr.f32.mxu0 %v40
    %239 = vmatmul.mubr.f32.gmra.mrb[0].mxu0 %v39
    %v240 = vpop.f32.mrb[0].mxu0
    %v241 = vadd.f32 0.0, %v240
    %v242 = vpop.f32.mrb[0].mxu0
    %243 = vmatprep.mubr.f32.mxu0 %v42
    %244 = vmatmul.mubr.f32.gmra.mrb[0].mxu0 %v41
    %v245 = vpop.f32.mrb[0].mxu0
    %v246 = vadd.f32 0.0, %v245
    %v247 = vpop.f32.mrb[0].mxu0
    %248 = vmatprep.mubr.f32.mxu0 %v44
    %249 = vmatmul.mubr.f32.gmra.mrb[0].mxu0 %v43
    %v250 = vpop.f32.mrb[0].mxu0
    %v251 = vadd.f32 0.0, %v250
    %v252 = vpop.f32.mrb[0].mxu0
    %253 = vmatprep.mubr.f32.mxu0 %v46
    %254 = vmatmul.mubr.f32.gmra.mrb[0].mxu0 %v45
    %v255 = vpop.f32.mrb[0].mxu0
    %v256 = vadd.f32 0.0, %v255
    %v257 = vpop.f32.mrb[0].mxu0
    %258 = vmatprep.mubr.f32.mxu0 %v48
    %259 = vmatmul.mubr.f32.gmra.mrb[0].mxu0 %v47
    %v260 = vpop.f32.mrb[0].mxu0
    %v261 = vadd.f32 0.0, %v260
    %v262 = vpop.f32.mrb[0].mxu0
    %263 = vmatprep.mubr.f32.mxu0 %v50
    %264 = vmatmul.mubr.f32.gmra.mrb[0].mxu0 %v49
    %v265 = vpop.f32.mrb[0].mxu0
    %v266 = vadd.f32 0.0, %v265
    %v267 = vpop.f32.mrb[0].mxu0
    %268 = vmatprep.mubr.f32.mxu0 %v52
    %269 = vmatmul.mubr.f32.gmra.mrb[0].mxu0 %v51
    %v270 = vpop.f32.mrb[0].mxu0
    %v271 = vadd.f32 0.0, %v270
    %v272 = vpop.f32.mrb[0].mxu0
    %273 = vmatprep.mubr.f32.mxu0 %v54
    %274 = vmatmul.mubr.f32.gmra.mrb[0].mxu0 %v53
    %v275 = vpop.f32.mrb[0].mxu0
    %v276 = vadd.f32 0.0, %v275
    %v277 = vpop.f32.mrb[0].mxu0
    %278 = vmatprep.mubr.f32.mxu0 %v56
    %279 = vmatmul.mubr.f32.gmra.mrb[0].mxu0 %v55
    %v280 = vpop.f32.mrb[0].mxu0
    %v281 = vadd.f32 0.0, %v280
    %v282 = vpop.f32.mrb[0].mxu0
    %283 = vmatprep.mubr.f32.mxu0 %v58
    %284 = vmatmul.mubr.f32.gmra.mrb[0].mxu0 %v57
    %v285 = vpop.f32.mrb[0].mxu0
    %v286 = vadd.f32 0.0, %v285
    %v287 = vpop.f32.mrb[0].mxu0
    %288 = vmatprep.mubr.f32.mxu0 %v60
    %289 = vmatmul.mubr.f32.gmra.mrb[0].mxu0 %v59
    %v290 = vpop.f32.mrb[0].mxu0
    %v291 = vadd.f32 0.0, %v290
    %v292 = vpop.f32.mrb[0].mxu0
    %293 = vmatprep.mubr.f32.mxu0 %v62
    %294 = vmatmul.mubr.f32.gmra.mrb[0].mxu0 %v61
    %v295 = vpop.f32.mrb[0].mxu0
    %v296 = vadd.f32 0.0, %v295
    %v297 = vpop.f32.mrb[0].mxu0
    %298 = vmatprep.mubr.f32.mxu0 %v64
    %299 = vmatmul.mubr.f32.gmra.mrb[0].mxu0 %v63
    %v300 = vpop.f32.mrb[0].mxu0
    %v301 = vadd.f32 0.0, %v300
    %v302 = vpop.f32.mrb[0].mxu0
    %303 = vmatprep.mubr.f32.mxu0 %v66
    %304 = vmatmul.mubr.f32.gmra.mrb[0].mxu0 %v65
    %v305 = vpop.f32.mrb[0].mxu0
    %v306 = vadd.f32 0.0, %v305
    %v307 = vpop.f32.mrb[0].mxu0
    %308 = vmatprep.mubr.f32.mxu0 %v68
    %309 = vmatmul.mubr.f32.gmra.mrb[0].mxu0 %v67
    %v310 = vpop.f32.mrb[0].mxu0
    %v311 = vadd.f32 0.0, %v310
    %v312 = vpop.f32.mrb[0].mxu0
    %313 = vmatprep.mubr.f32.mxu0 %v70
    %314 = vmatmul.mubr.f32.gmra.mrb[0].mxu0 %v69
    %v315 = vpop.f32.mrb[0].mxu0
    %v316 = vadd.f32 0.0, %v315
    %v317 = vpop.f32.mrb[0].mxu0
    %318 = vmatprep.mubr.f32.mxu0 %v72
    %319 = vmatmul.mubr.f32.gmra.mrb[0].mxu0 %v71
    %v320 = vpop.f32.mrb[0].mxu0
    %v321 = vadd.f32 0.0, %v320
    %v322 = vpop.f32.mrb[0].mxu0
    %323 = vmatprep.mubr.f32.mxu0 %v74
    %324 = vmatmul.mubr.f32.gmra.mrb[0].mxu0 %v73
    %v325 = vpop.f32.mrb[0].mxu0
    %v326 = vadd.f32 0.0, %v325
    %v327 = vpop.f32.mrb[0].mxu0
    %328 = vmatprep.mubr.f32.mxu0 %v76
    %329 = vmatmul.mubr.f32.gmra.mrb[0].mxu0 %v75
    %v330 = vpop.f32.mrb[0].mxu0
    %v331 = vadd.f32 0.0, %v330
    %v332 = vpop.f32.mrb[0].mxu0
    %333 = vmatprep.mubr.f32.mxu0 %v78
    %334 = vmatmul.mubr.f32.gmra.mrb[0].mxu0 %v77
    %v335 = vpop.f32.mrb[0].mxu0
    %v336 = vadd.f32 0.0, %v335
    %v337 = vpop.f32.mrb[0].mxu0
    %338 = vmatprep.mubr.f32.mxu0 %v80
    %339 = vmatmul.mubr.f32.gmra.mrb[0].mxu0 %v79
    %v340 = vpop.f32.mrb[0].mxu0
    %v341 = vadd.f32 0.0, %v340
    %v342 = vpop.f32.mrb[0].mxu0
    %343 = vmatprep.mubr.f32.mxu0 %v82
    %344 = vmatmul.mubr.f32.gmra.mrb[0].mxu0 %v81
    %v345 = vpop.f32.mrb[0].mxu0
    %v346 = vadd.f32 0.0, %v345
    %v347 = vpop.f32.mrb[0].mxu0
    %348 = vmatprep.mubr.f32.mxu0 %v84
    %349 = vmatmul.mubr.f32.gmra.mrb[0].mxu0 %v83
    %v350 = vpop.f32.mrb[0].mxu0
    %v351 = vadd.f32 0.0, %v350
    %v352 = vpop.f32.mrb[0].mxu0
    %353 = vmatprep.mubr.f32.mxu0 %v86
    %354 = vmatmul.mubr.f32.gmra.mrb[0].mxu0 %v85
    %v355 = vpop.f32.mrb[0].mxu0
    %v356 = vadd.f32 0.0, %v355
    %v357 = vpop.f32.mrb[0].mxu0
    %358 = vmatprep.mubr.f32.mxu0 %v88
    %359 = vmatmul.mubr.f32.gmra.mrb[0].mxu0 %v87
    %v360 = vpop.f32.mrb[0].mxu0
    %v361 = vadd.f32 0.0, %v360
    %v362 = vpop.f32.mrb[0].mxu0
    %363 = vmatprep.mubr.f32.mxu0 %v90
    %364 = vmatmul.mubr.f32.gmra.mrb[0].mxu0 %v89
    %v365 = vpop.f32.mrb[0].mxu0
    %v366 = vadd.f32 0.0, %v365
    %v367 = vpop.f32.mrb[0].mxu0
    %368 = vmatprep.mubr.f32.mxu0 %v92
    %369 = vmatmul.mubr.f32.gmra.mrb[0].mxu0 %v91
    %v370 = vpop.f32.mrb[0].mxu0
    %v371 = vadd.f32 0.0, %v370
    %v372 = vpop.f32.mrb[0].mxu0
    %373 = vmatprep.mubr.f32.mxu0 %v94
    %374 = vmatmul.mubr.f32.gmra.mrb[0].mxu0 %v93
    %v375 = vpop.f32.mrb[0].mxu0
    %v376 = vadd.f32 0.0, %v375
    %v377 = vpop.f32.mrb[0].mxu0
    %378 = vmatprep.mubr.f32.mxu0 %v96
    %379 = vmatmul.mubr.f32.gmra.mrb[0].mxu0 %v95
    %v380 = vpop.f32.mrb[0].mxu0
    %v381 = vadd.f32 0.0, %v380
    %v382 = vpop.f32.mrb[0].mxu0
    %383 = vmatprep.mubr.f32.mxu0 %v98
    %384 = vmatmul.mubr.f32.gmra.mrb[0].mxu0 %v97
    %v385 = vpop.f32.mrb[0].mxu0
    %v386 = vadd.f32 0.0, %v385
    %v387 = vpop.f32.mrb[0].mxu0
    %388 = vdwg.mxu0
    %v389 = vadd.f32 %v132, %v231
    %v390 = vadd.f32 %v133, %v236
    %v391 = vadd.f32 %v134, %v241
    %v392 = vadd.f32 %v135, %v246
    %v393 = vadd.f32 %v136, %v251
    %v394 = vadd.f32 %v137, %v256
    %v395 = vadd.f32 %v138, %v261
    %v396 = vadd.f32 %v139, %v266
    %v397 = vadd.f32 %v140, %v271
    %v398 = vadd.f32 %v141, %v276
    %v399 = vadd.f32 %v142, %v281
    %v400 = vadd.f32 %v143, %v286
    %v401 = vadd.f32 %v144, %v291
    %v402 = vadd.f32 %v145, %v296
    %v403 = vadd.f32 %v146, %v301
    %v404 = vadd.f32 %v147, %v306
    %v405 = vadd.f32 %v148, %v311
    %v406 = vadd.f32 %v149, %v316
    %v407 = vadd.f32 %v150, %v321
    %v408 = vadd.f32 %v151, %v326
    %v409 = vadd.f32 %v152, %v331
    %v410 = vadd.f32 %v153, %v336
    %v411 = vadd.f32 %v154, %v341
    %v412 = vadd.f32 %v155, %v346
    %v413 = vadd.f32 %v156, %v351
    %v414 = vadd.f32 %v157, %v356
    %v415 = vadd.f32 %v158, %v361
    %v416 = vadd.f32 %v159, %v366
    %v417 = vadd.f32 %v160, %v371
    %v418 = vadd.f32 %v161, %v376
    %v419 = vadd.f32 %v162, %v381
    %v420 = vadd.f32 %v163, %v386
    %v421 = vld [vmem:[%s2] sm:$0xff]
    %v422 = vld [vmem:[%s2 + $0x8] sm:$0xff]
    %v423 = vld [vmem:[%s2 + $0x10] sm:$0xff]
    %v424 = vld [vmem:[%s2 + $0x18] sm:$0xff]
    %v425 = vld [vmem:[%s2 + $0x20] sm:$0xff]
    %v426 = vld [vmem:[%s2 + $0x28] sm:$0xff]
    %v427 = vld [vmem:[%s2 + $0x30] sm:$0xff]
    %v428 = vld [vmem:[%s2 + $0x38] sm:$0xff]
    %v429 = vmul.f32 %v231, %v132
    %v430 = vmul.f32 %v236, %v133
    %v431 = vmul.f32 %v241, %v134
    %v432 = vmul.f32 %v246, %v135
    %v433 = vmul.f32 %v251, %v136
    %v434 = vmul.f32 %v256, %v137
    %v435 = vmul.f32 %v261, %v138
    %v436 = vmul.f32 %v266, %v139
    %v437 = vmul.f32 %v271, %v140
    %v438 = vmul.f32 %v276, %v141
    %v439 = vmul.f32 %v281, %v142
    %v440 = vmul.f32 %v286, %v143
    %v441 = vmul.f32 %v291, %v144
    %v442 = vmul.f32 %v296, %v145
    %v443 = vmul.f32 %v301, %v146
    %v444 = vmul.f32 %v306, %v147
    %v445 = vmul.f32 %v311, %v148
    %v446 = vmul.f32 %v316, %v149
    %v447 = vmul.f32 %v321, %v150
    %v448 = vmul.f32 %v326, %v151
    %v449 = vmul.f32 %v331, %v152
    %v450 = vmul.f32 %v336, %v153
    %v451 = vmul.f32 %v341, %v154
    %v452 = vmul.f32 %v346, %v155
    %v453 = vmul.f32 %v351, %v156
    %v454 = vmul.f32 %v356, %v157
    %v455 = vmul.f32 %v361, %v158
    %v456 = vmul.f32 %v366, %v159
    %v457 = vmul.f32 %v371, %v160
    %v458 = vmul.f32 %v376, %v161
    %v459 = vmul.f32 %v381, %v162
    %v460 = vmul.f32 %v386, %v163
    %v461 = vld [vmem:[%s3] sm:$0xff]
    %v462 = vld [vmem:[%s3 + $0x8] sm:$0xff]
    %v463 = vld [vmem:[%s3 + $0x10] sm:$0xff]
    %v464 = vld [vmem:[%s3 + $0x18] sm:$0xff]
    %v465 = vld [vmem:[%s3 + $0x20] sm:$0xff]
    %v466 = vld [vmem:[%s3 + $0x28] sm:$0xff]
    %v467 = vld [vmem:[%s3 + $0x30] sm:$0xff]
    %v468 = vld [vmem:[%s3 + $0x38] sm:$0xff]
    %vm469 = vcmask 523264
    %v471 = vsel %vm469, %v429, 0
    %v474 = vsel %vm469, %v430, 0
    %v477 = vsel %vm469, %v431, 0
    %v480 = vsel %vm469, %v432, 0
    %v483 = vsel %vm469, %v433, 0
    %v486 = vsel %vm469, %v434, 0
    %v489 = vsel %vm469, %v435, 0
    %v492 = vsel %vm469, %v436, 0
    %v495 = vsel %vm469, %v437, 0
    %v498 = vsel %vm469, %v438, 0
    %v501 = vsel %vm469, %v439, 0
    %v504 = vsel %vm469, %v440, 0
    %v507 = vsel %vm469, %v441, 0
    %v510 = vsel %vm469, %v442, 0
    %v513 = vsel %vm469, %v443, 0
    %v516 = vsel %vm469, %v444, 0
    %v519 = vsel %vm469, %v445, 0
    %v522 = vsel %vm469, %v446, 0
    %v525 = vsel %vm469, %v447, 0
    %v528 = vsel %vm469, %v448, 0
    %v531 = vsel %vm469, %v449, 0
    %v534 = vsel %vm469, %v450, 0
    %v537 = vsel %vm469, %v451, 0
    %v540 = vsel %vm469, %v452, 0
    %v543 = vsel %vm469, %v453, 0
    %v546 = vsel %vm469, %v454, 0
    %v549 = vsel %vm469, %v455, 0
    %v552 = vsel %vm469, %v456, 0
    %v555 = vsel %vm469, %v457, 0
    %v558 = vsel %vm469, %v458, 0
    %v561 = vsel %vm469, %v459, 0
    %v564 = vsel %vm469, %v460, 0
    %566 = vmatprep.subr.mxu0 0.0
    %567 = vmatpush1.msra.mxu0 %v461
    %568 = vmatprep.subr.mxu0 0.0
    %569 = vmatpush1.msra.mxu0 %v462
    %570 = vmatprep.subr.mxu0 0.0
    %571 = vmatpush1.msra.mxu0 %v463
    %572 = vmatprep.subr.mxu0 0.0
    %573 = vmatpush1.msra.mxu0 %v464
    %574 = vmatprep.subr.mxu0 0.0
    %575 = vmatpush1.msra.mxu0 %v465
    %576 = vmatprep.subr.mxu0 0.0
    %577 = vmatpush1.msra.mxu0 %v466
    %578 = vmatprep.subr.mxu0 0.0
    %579 = vmatpush1.msra.mxu0 %v467
    %580 = vmatprep.subr.mxu0 0.0
    %581 = vmatpush1.msra.mxu0 %v468
    %582 = vmatprep.subr.mxu0 0.0
    %583 = vmatpush1.msra.mxu0 0.0
    %584 = vmatprep.subr.mxu0 0.0
    %585 = vmatpush1.msra.mxu0 0.0
    %586 = vmatprep.subr.mxu0 0.0
    %587 = vmatpush1.msra.mxu0 0.0
    %588 = vmatprep.subr.mxu0 0.0
    %589 = vmatpush1.msra.mxu0 0.0
    %590 = vmatprep.subr.mxu0 0.0
    %591 = vmatpush1.msra.mxu0 0.0
    %592 = vmatprep.subr.mxu0 0.0
    %593 = vmatpush1.msra.mxu0 0.0
    %594 = vmatprep.subr.mxu0 0.0
    %595 = vmatpush1.msra.mxu0 0.0
    %596 = vmatprep.subr.mxu0 0.0
    %597 = vmatpush1.msra.mxu0 0.0
    %598 = vmatprep.subr.mxu0 0.0
    %599 = vmatpush1.msra.mxu0 0.0
    %600 = vmatprep.subr.mxu0 0.0
    %601 = vmatpush1.msra.mxu0 0.0
    %602 = vmatprep.subr.mxu0 0.0
    %603 = vmatpush1.msra.mxu0 0.0
    %604 = vmatprep.subr.mxu0 0.0
    %605 = vmatpush1.msra.mxu0 0.0
    %606 = vmatprep.subr.mxu0 0.0
    %607 = vmatpush1.msra.mxu0 0.0
    %608 = vmatprep.subr.mxu0 0.0
    %609 = vmatpush1.msra.mxu0 0.0
    %610 = vmatprep.subr.mxu0 0.0
    %611 = vmatpush1.msra.mxu0 0.0
    %612 = vmatprep.subr.mxu0 0.0
    %613 = vmatpush1.msra.mxu0 0.0
    %614 = vmatprep.subr.mxu0 0.0
    %615 = vmatpush1.msra.mxu0 0.0
    %616 = vmatprep.subr.mxu0 0.0
    %617 = vmatpush1.msra.mxu0 0.0
    %618 = vmatprep.subr.mxu0 0.0
    %619 = vmatpush1.msra.mxu0 0.0
    %620 = vmatprep.subr.mxu0 0.0
    %621 = vmatpush1.msra.mxu0 0.0
    %622 = vmatprep.subr.mxu0 0.0
    %623 = vmatpush1.msra.mxu0 0.0
    %624 = vmatprep.subr.mxu0 0.0
    %625 = vmatpush1.msra.mxu0 0.0
    %626 = vmatprep.subr.mxu0 0.0
    %627 = vmatpush1.msra.mxu0 0.0
    %628 = vmatprep.subr.mxu0 0.0
    %629 = vmatpush1.msra.mxu0 0.0
    %630 = vmatprep.mubr.f32.mxu0 0.0
    %631 = vmatmul.mubr.f32.gmra.mrb[0].mxu0 %v471
    %v632 = vpop.f32.mrb[0].mxu0
    %v633 = vadd.f32 0.0, %v632
    %v634 = vpop.f32.mrb[0].mxu0
    %635 = vmatprep.mubr.f32.mxu0 0.0
    %636 = vmatmul.mubr.f32.gmra.mrb[0].mxu0 %v474
    %v637 = vpop.f32.mrb[0].mxu0
    %v638 = vadd.f32 0.0, %v637
    %v639 = vpop.f32.mrb[0].mxu0
    %640 = vmatprep.mubr.f32.mxu0 0.0
    %641 = vmatmul.mubr.f32.gmra.mrb[0].mxu0 %v477
    %v642 = vpop.f32.mrb[0].mxu0
    %v643 = vadd.f32 0.0, %v642
    %v644 = vpop.f32.mrb[0].mxu0
    %645 = vmatprep.mubr.f32.mxu0 0.0
    %646 = vmatmul.mubr.f32.gmra.mrb[0].mxu0 %v480
    %v647 = vpop.f32.mrb[0].mxu0
    %v648 = vadd.f32 0.0, %v647
    %v649 = vpop.f32.mrb[0].mxu0
    %650 = vmatprep.mubr.f32.mxu0 0.0
    %651 = vmatmul.mubr.f32.gmra.mrb[0].mxu0 %v483
    %v652 = vpop.f32.mrb[0].mxu0
    %v653 = vadd.f32 0.0, %v652
    %v654 = vpop.f32.mrb[0].mxu0
    %655 = vmatprep.mubr.f32.mxu0 0.0
    %656 = vmatmul.mubr.f32.gmra.mrb[0].mxu0 %v486
    %v657 = vpop.f32.mrb[0].mxu0
    %v658 = vadd.f32 0.0, %v657
    %v659 = vpop.f32.mrb[0].mxu0
    %660 = vmatprep.mubr.f32.mxu0 0.0
    %661 = vmatmul.mubr.f32.gmra.mrb[0].mxu0 %v489
    %v662 = vpop.f32.mrb[0].mxu0
    %v663 = vadd.f32 0.0, %v662
    %v664 = vpop.f32.mrb[0].mxu0
    %665 = vmatprep.mubr.f32.mxu0 0.0
    %666 = vmatmul.mubr.f32.gmra.mrb[0].mxu0 %v492
    %v667 = vpop.f32.mrb[0].mxu0
    %v668 = vadd.f32 0.0, %v667
    %v669 = vpop.f32.mrb[0].mxu0
    %670 = vmatprep.mubr.f32.mxu0 0.0
    %671 = vmatmul.mubr.f32.gmra.mrb[0].mxu0 %v495
    %v672 = vpop.f32.mrb[0].mxu0
    %v673 = vadd.f32 0.0, %v672
    %v674 = vpop.f32.mrb[0].mxu0
    %675 = vmatprep.mubr.f32.mxu0 0.0
    %676 = vmatmul.mubr.f32.gmra.mrb[0].mxu0 %v498
    %v677 = vpop.f32.mrb[0].mxu0
    %v678 = vadd.f32 0.0, %v677
    %v679 = vpop.f32.mrb[0].mxu0
    %680 = vmatprep.mubr.f32.mxu0 0.0
    %681 = vmatmul.mubr.f32.gmra.mrb[0].mxu0 %v501
    %v682 = vpop.f32.mrb[0].mxu0
    %v683 = vadd.f32 0.0, %v682
    %v684 = vpop.f32.mrb[0].mxu0
    %685 = vmatprep.mubr.f32.mxu0 0.0
    %686 = vmatmul.mubr.f32.gmra.mrb[0].mxu0 %v504
    %v687 = vpop.f32.mrb[0].mxu0
    %v688 = vadd.f32 0.0, %v687
    %v689 = vpop.f32.mrb[0].mxu0
    %690 = vmatprep.mubr.f32.mxu0 0.0
    %691 = vmatmul.mubr.f32.gmra.mrb[0].mxu0 %v507
    %v692 = vpop.f32.mrb[0].mxu0
    %v693 = vadd.f32 0.0, %v692
    %v694 = vpop.f32.mrb[0].mxu0
    %695 = vmatprep.mubr.f32.mxu0 0.0
    %696 = vmatmul.mubr.f32.gmra.mrb[0].mxu0 %v510
    %v697 = vpop.f32.mrb[0].mxu0
    %v698 = vadd.f32 0.0, %v697
    %v699 = vpop.f32.mrb[0].mxu0
    %700 = vmatprep.mubr.f32.mxu0 0.0
    %701 = vmatmul.mubr.f32.gmra.mrb[0].mxu0 %v513
    %v702 = vpop.f32.mrb[0].mxu0
    %v703 = vadd.f32 0.0, %v702
    %v704 = vpop.f32.mrb[0].mxu0
    %705 = vmatprep.mubr.f32.mxu0 0.0
    %706 = vmatmul.mubr.f32.gmra.mrb[0].mxu0 %v516
    %v707 = vpop.f32.mrb[0].mxu0
    %v708 = vadd.f32 0.0, %v707
    %v709 = vpop.f32.mrb[0].mxu0
    %710 = vmatprep.mubr.f32.mxu0 0.0
    %711 = vmatmul.mubr.f32.gmra.mrb[0].mxu0 %v519
    %v712 = vpop.f32.mrb[0].mxu0
    %v713 = vadd.f32 0.0, %v712
    %v714 = vpop.f32.mrb[0].mxu0
    %715 = vmatprep.mubr.f32.mxu0 0.0
    %716 = vmatmul.mubr.f32.gmra.mrb[0].mxu0 %v522
    %v717 = vpop.f32.mrb[0].mxu0
    %v718 = vadd.f32 0.0, %v717
    %v719 = vpop.f32.mrb[0].mxu0
    %720 = vmatprep.mubr.f32.mxu0 0.0
    %721 = vmatmul.mubr.f32.gmra.mrb[0].mxu0 %v525
    %v722 = vpop.f32.mrb[0].mxu0
    %v723 = vadd.f32 0.0, %v722
    %v724 = vpop.f32.mrb[0].mxu0
    %725 = vmatprep.mubr.f32.mxu0 0.0
    %726 = vmatmul.mubr.f32.gmra.mrb[0].mxu0 %v528
    %v727 = vpop.f32.mrb[0].mxu0
    %v728 = vadd.f32 0.0, %v727
    %v729 = vpop.f32.mrb[0].mxu0
    %730 = vmatprep.mubr.f32.mxu0 0.0
    %731 = vmatmul.mubr.f32.gmra.mrb[0].mxu0 %v531
    %v732 = vpop.f32.mrb[0].mxu0
    %v733 = vadd.f32 0.0, %v732
    %v734 = vpop.f32.mrb[0].mxu0
    %735 = vmatprep.mubr.f32.mxu0 0.0
    %736 = vmatmul.mubr.f32.gmra.mrb[0].mxu0 %v534
    %v737 = vpop.f32.mrb[0].mxu0
    %v738 = vadd.f32 0.0, %v737
    %v739 = vpop.f32.mrb[0].mxu0
    %740 = vmatprep.mubr.f32.mxu0 0.0
    %741 = vmatmul.mubr.f32.gmra.mrb[0].mxu0 %v537
    %v742 = vpop.f32.mrb[0].mxu0
    %v743 = vadd.f32 0.0, %v742
    %v744 = vpop.f32.mrb[0].mxu0
    %745 = vmatprep.mubr.f32.mxu0 0.0
    %746 = vmatmul.mubr.f32.gmra.mrb[0].mxu0 %v540
    %v747 = vpop.f32.mrb[0].mxu0
    %v748 = vadd.f32 0.0, %v747
    %v749 = vpop.f32.mrb[0].mxu0
    %750 = vmatprep.mubr.f32.mxu0 0.0
    %751 = vmatmul.mubr.f32.gmra.mrb[0].mxu0 %v543
    %v752 = vpop.f32.mrb[0].mxu0
    %v753 = vadd.f32 0.0, %v752
    %v754 = vpop.f32.mrb[0].mxu0
    %755 = vmatprep.mubr.f32.mxu0 0.0
    %756 = vmatmul.mubr.f32.gmra.mrb[0].mxu0 %v546
    %v757 = vpop.f32.mrb[0].mxu0
    %v758 = vadd.f32 0.0, %v757
    %v759 = vpop.f32.mrb[0].mxu0
    %760 = vmatprep.mubr.f32.mxu0 0.0
    %761 = vmatmul.mubr.f32.gmra.mrb[0].mxu0 %v549
    %v762 = vpop.f32.mrb[0].mxu0
    %v763 = vadd.f32 0.0, %v762
    %v764 = vpop.f32.mrb[0].mxu0
    %765 = vmatprep.mubr.f32.mxu0 0.0
    %766 = vmatmul.mubr.f32.gmra.mrb[0].mxu0 %v552
    %v767 = vpop.f32.mrb[0].mxu0
    %v768 = vadd.f32 0.0, %v767
    %v769 = vpop.f32.mrb[0].mxu0
    %770 = vmatprep.mubr.f32.mxu0 0.0
    %771 = vmatmul.mubr.f32.gmra.mrb[0].mxu0 %v555
    %v772 = vpop.f32.mrb[0].mxu0
    %v773 = vadd.f32 0.0, %v772
    %v774 = vpop.f32.mrb[0].mxu0
    %775 = vmatprep.mubr.f32.mxu0 0.0
    %776 = vmatmul.mubr.f32.gmra.mrb[0].mxu0 %v558
    %v777 = vpop.f32.mrb[0].mxu0
    %v778 = vadd.f32 0.0, %v777
    %v779 = vpop.f32.mrb[0].mxu0
    %780 = vmatprep.mubr.f32.mxu0 0.0
    %781 = vmatmul.mubr.f32.gmra.mrb[0].mxu0 %v561
    %v782 = vpop.f32.mrb[0].mxu0
    %v783 = vadd.f32 0.0, %v782
    %v784 = vpop.f32.mrb[0].mxu0
    %785 = vmatprep.mubr.f32.mxu0 0.0
    %786 = vmatmul.mubr.f32.gmra.mrb[0].mxu0 %v564
    %v787 = vpop.f32.mrb[0].mxu0
    %v788 = vadd.f32 0.0, %v787
    %v789 = vpop.f32.mrb[0].mxu0
    %790 = vdwg.mxu0
    %v792 = vsel %vm469, %v389, 0
    %v795 = vsel %vm469, %v390, 0
    %v798 = vsel %vm469, %v391, 0
    %v801 = vsel %vm469, %v392, 0
    %v804 = vsel %vm469, %v393, 0
    %v807 = vsel %vm469, %v394, 0
    %v810 = vsel %vm469, %v395, 0
    %v813 = vsel %vm469, %v396, 0
    %v816 = vsel %vm469, %v397, 0
    %v819 = vsel %vm469, %v398, 0
    %v822 = vsel %vm469, %v399, 0
    %v825 = vsel %vm469, %v400, 0
    %v828 = vsel %vm469, %v401, 0
    %v831 = vsel %vm469, %v402, 0
    %v834 = vsel %vm469, %v403, 0
    %v837 = vsel %vm469, %v404, 0
    %v840 = vsel %vm469, %v405, 0
    %v843 = vsel %vm469, %v406, 0
    %v846 = vsel %vm469, %v407, 0
    %v849 = vsel %vm469, %v408, 0
    %v852 = vsel %vm469, %v409, 0
    %v855 = vsel %vm469, %v410, 0
    %v858 = vsel %vm469, %v411, 0
    %v861 = vsel %vm469, %v412, 0
    %v864 = vsel %vm469, %v413, 0
    %v867 = vsel %vm469, %v414, 0
    %v870 = vsel %vm469, %v415, 0
    %v873 = vsel %vm469, %v416, 0
    %v876 = vsel %vm469, %v417, 0
    %v879 = vsel %vm469, %v418, 0
    %v882 = vsel %vm469, %v419, 0
    %v885 = vsel %vm469, %v420, 0
    %887 = vmatprep.subr.mxu0 0.0
    %888 = vmatpush1.msra.mxu0 %v421
    %889 = vmatprep.subr.mxu0 0.0
    %890 = vmatpush1.msra.mxu0 %v422
    %891 = vmatprep.subr.mxu0 0.0
    %892 = vmatpush1.msra.mxu0 %v423
    %893 = vmatprep.subr.mxu0 0.0
    %894 = vmatpush1.msra.mxu0 %v424
    %895 = vmatprep.subr.mxu0 0.0
    %896 = vmatpush1.msra.mxu0 %v425
    %897 = vmatprep.subr.mxu0 0.0
    %898 = vmatpush1.msra.mxu0 %v426
    %899 = vmatprep.subr.mxu0 0.0
    %900 = vmatpush1.msra.mxu0 %v427
    %901 = vmatprep.subr.mxu0 0.0
    %902 = vmatpush1.msra.mxu0 %v428
    %903 = vmatprep.subr.mxu0 0.0
    %904 = vmatpush1.msra.mxu0 0.0
    %905 = vmatprep.subr.mxu0 0.0
    %906 = vmatpush1.msra.mxu0 0.0
    %907 = vmatprep.subr.mxu0 0.0
    %908 = vmatpush1.msra.mxu0 0.0
    %909 = vmatprep.subr.mxu0 0.0
    %910 = vmatpush1.msra.mxu0 0.0
    %911 = vmatprep.subr.mxu0 0.0
    %912 = vmatpush1.msra.mxu0 0.0
    %913 = vmatprep.subr.mxu0 0.0
    %914 = vmatpush1.msra.mxu0 0.0
    %915 = vmatprep.subr.mxu0 0.0
    %916 = vmatpush1.msra.mxu0 0.0
    %917 = vmatprep.subr.mxu0 0.0
    %918 = vmatpush1.msra.mxu0 0.0
    %919 = vmatprep.subr.mxu0 0.0
    %920 = vmatpush1.msra.mxu0 0.0
    %921 = vmatprep.subr.mxu0 0.0
    %922 = vmatpush1.msra.mxu0 0.0
    %923 = vmatprep.subr.mxu0 0.0
    %924 = vmatpush1.msra.mxu0 0.0
    %925 = vmatprep.subr.mxu0 0.0
    %926 = vmatpush1.msra.mxu0 0.0
    %927 = vmatprep.subr.mxu0 0.0
    %928 = vmatpush1.msra.mxu0 0.0
    %929 = vmatprep.subr.mxu0 0.0
    %930 = vmatpush1.msra.mxu0 0.0
    %931 = vmatprep.subr.mxu0 0.0
    %932 = vmatpush1.msra.mxu0 0.0
    %933 = vmatprep.subr.mxu0 0.0
    %934 = vmatpush1.msra.mxu0 0.0
    %935 = vmatprep.subr.mxu0 0.0
    %936 = vmatpush1.msra.mxu0 0.0
    %937 = vmatprep.subr.mxu0 0.0
    %938 = vmatpush1.msra.mxu0 0.0
    %939 = vmatprep.subr.mxu0 0.0
    %940 = vmatpush1.msra.mxu0 0.0
    %941 = vmatprep.subr.mxu0 0.0
    %942 = vmatpush1.msra.mxu0 0.0
    %943 = vmatprep.subr.mxu0 0.0
    %944 = vmatpush1.msra.mxu0 0.0
    %945 = vmatprep.subr.mxu0 0.0
    %946 = vmatpush1.msra.mxu0 0.0
    %947 = vmatprep.subr.mxu0 0.0
    %948 = vmatpush1.msra.mxu0 0.0
    %949 = vmatprep.subr.mxu0 0.0
    %950 = vmatpush1.msra.mxu0 0.0
    %951 = vmatprep.mubr.f32.mxu0 0.0
    %952 = vmatmul.mubr.f32.gmra.mrb[0].mxu0 %v792
    %v953 = vpop.f32.mrb[0].mxu0
    %v954 = vadd.f32 %v633, %v953
    %v955 = vpop.f32.mrb[0].mxu0
    %956 = vmatprep.mubr.f32.mxu0 0.0
    %957 = vmatmul.mubr.f32.gmra.mrb[0].mxu0 %v795
    %v958 = vpop.f32.mrb[0].mxu0
    %v959 = vadd.f32 %v638, %v958
    %v960 = vpop.f32.mrb[0].mxu0
    %961 = vmatprep.mubr.f32.mxu0 0.0
    %962 = vmatmul.mubr.f32.gmra.mrb[0].mxu0 %v798
    %v963 = vpop.f32.mrb[0].mxu0
    %v964 = vadd.f32 %v643, %v963
    %v965 = vpop.f32.mrb[0].mxu0
    %966 = vmatprep.mubr.f32.mxu0 0.0
    %967 = vmatmul.mubr.f32.gmra.mrb[0].mxu0 %v801
    %v968 = vpop.f32.mrb[0].mxu0
    %v969 = vadd.f32 %v648, %v968
    %v970 = vpop.f32.mrb[0].mxu0
    %971 = vmatprep.mubr.f32.mxu0 0.0
    %972 = vmatmul.mubr.f32.gmra.mrb[0].mxu0 %v804
    %v973 = vpop.f32.mrb[0].mxu0
    %v974 = vadd.f32 %v653, %v973
    %v975 = vpop.f32.mrb[0].mxu0
    %976 = vmatprep.mubr.f32.mxu0 0.0
    %977 = vmatmul.mubr.f32.gmra.mrb[0].mxu0 %v807
    %v978 = vpop.f32.mrb[0].mxu0
    %v979 = vadd.f32 %v658, %v978
    %v980 = vpop.f32.mrb[0].mxu0
    %981 = vmatprep.mubr.f32.mxu0 0.0
    %982 = vmatmul.mubr.f32.gmra.mrb[0].mxu0 %v810
    %v983 = vpop.f32.mrb[0].mxu0
    %v984 = vadd.f32 %v663, %v983
    %v985 = vpop.f32.mrb[0].mxu0
    %986 = vmatprep.mubr.f32.mxu0 0.0
    %987 = vmatmul.mubr.f32.gmra.mrb[0].mxu0 %v813
    %v988 = vpop.f32.mrb[0].mxu0
    %v989 = vadd.f32 %v668, %v988
    %v990 = vpop.f32.mrb[0].mxu0
    %991 = vmatprep.mubr.f32.mxu0 0.0
    %992 = vmatmul.mubr.f32.gmra.mrb[0].mxu0 %v816
    %v993 = vpop.f32.mrb[0].mxu0
    %v994 = vadd.f32 %v673, %v993
    %v995 = vpop.f32.mrb[0].mxu0
    %996 = vmatprep.mubr.f32.mxu0 0.0
    %997 = vmatmul.mubr.f32.gmra.mrb[0].mxu0 %v819
    %v998 = vpop.f32.mrb[0].mxu0
    %v999 = vadd.f32 %v678, %v998
    %v1000 = vpop.f32.mrb[0].mxu0
    %1001 = vmatprep.mubr.f32.mxu0 0.0
    %1002 = vmatmul.mubr.f32.gmra.mrb[0].mxu0 %v822
    %v1003 = vpop.f32.mrb[0].mxu0
    %v1004 = vadd.f32 %v683, %v1003
    %v1005 = vpop.f32.mrb[0].mxu0
    %1006 = vmatprep.mubr.f32.mxu0 0.0
    %1007 = vmatmul.mubr.f32.gmra.mrb[0].mxu0 %v825
    %v1008 = vpop.f32.mrb[0].mxu0
    %v1009 = vadd.f32 %v688, %v1008
    %v1010 = vpop.f32.mrb[0].mxu0
    %1011 = vmatprep.mubr.f32.mxu0 0.0
    %1012 = vmatmul.mubr.f32.gmra.mrb[0].mxu0 %v828
    %v1013 = vpop.f32.mrb[0].mxu0
    %v1014 = vadd.f32 %v693, %v1013
    %v1015 = vpop.f32.mrb[0].mxu0
    %1016 = vmatprep.mubr.f32.mxu0 0.0
    %1017 = vmatmul.mubr.f32.gmra.mrb[0].mxu0 %v831
    %v1018 = vpop.f32.mrb[0].mxu0
    %v1019 = vadd.f32 %v698, %v1018
    %v1020 = vpop.f32.mrb[0].mxu0
    %1021 = vmatprep.mubr.f32.mxu0 0.0
    %1022 = vmatmul.mubr.f32.gmra.mrb[0].mxu0 %v834
    %v1023 = vpop.f32.mrb[0].mxu0
    %v1024 = vadd.f32 %v703, %v1023
    %v1025 = vpop.f32.mrb[0].mxu0
    %1026 = vmatprep.mubr.f32.mxu0 0.0
    %1027 = vmatmul.mubr.f32.gmra.mrb[0].mxu0 %v837
    %v1028 = vpop.f32.mrb[0].mxu0
    %v1029 = vadd.f32 %v708, %v1028
    %v1030 = vpop.f32.mrb[0].mxu0
    %1031 = vmatprep.mubr.f32.mxu0 0.0
    %1032 = vmatmul.mubr.f32.gmra.mrb[0].mxu0 %v840
    %v1033 = vpop.f32.mrb[0].mxu0
    %v1034 = vadd.f32 %v713, %v1033
    %v1035 = vpop.f32.mrb[0].mxu0
    %1036 = vmatprep.mubr.f32.mxu0 0.0
    %1037 = vmatmul.mubr.f32.gmra.mrb[0].mxu0 %v843
    %v1038 = vpop.f32.mrb[0].mxu0
    %v1039 = vadd.f32 %v718, %v1038
    %v1040 = vpop.f32.mrb[0].mxu0
    %1041 = vmatprep.mubr.f32.mxu0 0.0
    %1042 = vmatmul.mubr.f32.gmra.mrb[0].mxu0 %v846
    %v1043 = vpop.f32.mrb[0].mxu0
    %v1044 = vadd.f32 %v723, %v1043
    %v1045 = vpop.f32.mrb[0].mxu0
    %1046 = vmatprep.mubr.f32.mxu0 0.0
    %1047 = vmatmul.mubr.f32.gmra.mrb[0].mxu0 %v849
    %v1048 = vpop.f32.mrb[0].mxu0
    %v1049 = vadd.f32 %v728, %v1048
    %v1050 = vpop.f32.mrb[0].mxu0
    %1051 = vmatprep.mubr.f32.mxu0 0.0
    %1052 = vmatmul.mubr.f32.gmra.mrb[0].mxu0 %v852
    %v1053 = vpop.f32.mrb[0].mxu0
    %v1054 = vadd.f32 %v733, %v1053
    %v1055 = vpop.f32.mrb[0].mxu0
    %1056 = vmatprep.mubr.f32.mxu0 0.0
    %1057 = vmatmul.mubr.f32.gmra.mrb[0].mxu0 %v855
    %v1058 = vpop.f32.mrb[0].mxu0
    %v1059 = vadd.f32 %v738, %v1058
    %v1060 = vpop.f32.mrb[0].mxu0
    %1061 = vmatprep.mubr.f32.mxu0 0.0
    %1062 = vmatmul.mubr.f32.gmra.mrb[0].mxu0 %v858
    %v1063 = vpop.f32.mrb[0].mxu0
    %v1064 = vadd.f32 %v743, %v1063
    %v1065 = vpop.f32.mrb[0].mxu0
    %1066 = vmatprep.mubr.f32.mxu0 0.0
    %1067 = vmatmul.mubr.f32.gmra.mrb[0].mxu0 %v861
    %v1068 = vpop.f32.mrb[0].mxu0
    %v1069 = vadd.f32 %v748, %v1068
    %v1070 = vpop.f32.mrb[0].mxu0
    %1071 = vmatprep.mubr.f32.mxu0 0.0
    %1072 = vmatmul.mubr.f32.gmra.mrb[0].mxu0 %v864
    %v1073 = vpop.f32.mrb[0].mxu0
    %v1074 = vadd.f32 %v753, %v1073
    %v1075 = vpop.f32.mrb[0].mxu0
    %1076 = vmatprep.mubr.f32.mxu0 0.0
    %1077 = vmatmul.mubr.f32.gmra.mrb[0].mxu0 %v867
    %v1078 = vpop.f32.mrb[0].mxu0
    %v1079 = vadd.f32 %v758, %v1078
    %v1080 = vpop.f32.mrb[0].mxu0
    %1081 = vmatprep.mubr.f32.mxu0 0.0
    %1082 = vmatmul.mubr.f32.gmra.mrb[0].mxu0 %v870
    %v1083 = vpop.f32.mrb[0].mxu0
    %v1084 = vadd.f32 %v763, %v1083
    %v1085 = vpop.f32.mrb[0].mxu0
    %1086 = vmatprep.mubr.f32.mxu0 0.0
    %1087 = vmatmul.mubr.f32.gmra.mrb[0].mxu0 %v873
    %v1088 = vpop.f32.mrb[0].mxu0
    %v1089 = vadd.f32 %v768, %v1088
    %v1090 = vpop.f32.mrb[0].mxu0
    %1091 = vmatprep.mubr.f32.mxu0 0.0
    %1092 = vmatmul.mubr.f32.gmra.mrb[0].mxu0 %v876
    %v1093 = vpop.f32.mrb[0].mxu0
    %v1094 = vadd.f32 %v773, %v1093
    %v1095 = vpop.f32.mrb[0].mxu0
    %1096 = vmatprep.mubr.f32.mxu0 0.0
    %1097 = vmatmul.mubr.f32.gmra.mrb[0].mxu0 %v879
    %v1098 = vpop.f32.mrb[0].mxu0
    %v1099 = vadd.f32 %v778, %v1098
    %v1100 = vpop.f32.mrb[0].mxu0
    %1101 = vmatprep.mubr.f32.mxu0 0.0
    %1102 = vmatmul.mubr.f32.gmra.mrb[0].mxu0 %v882
    %v1103 = vpop.f32.mrb[0].mxu0
    %v1104 = vadd.f32 %v783, %v1103
    %v1105 = vpop.f32.mrb[0].mxu0
    %1106 = vmatprep.mubr.f32.mxu0 0.0
    %1107 = vmatmul.mubr.f32.gmra.mrb[0].mxu0 %v885
    %v1108 = vpop.f32.mrb[0].mxu0
    %v1109 = vadd.f32 %v788, %v1108
    %v1110 = vpop.f32.mrb[0].mxu0
    %1111 = vdwg.mxu0
    %v1112 = vld [vmem:[%s4] sm:$0x1]
    %v1114 = vlaneseq
    %v1115 = vshrl.u32 %v1114, 7
    %v1116 = vsub.s32 0, %v1115
    %v1117 = vrot.slane %v1112, %v1116
    %v1119 = vadd.f32 %v954, %v1117
    %v1120 = vadd.f32 %v959, %v1117
    %v1121 = vadd.f32 %v964, %v1117
    %v1122 = vadd.f32 %v969, %v1117
    %v1123 = vadd.f32 %v974, %v1117
    %v1124 = vadd.f32 %v979, %v1117
    %v1125 = vadd.f32 %v984, %v1117
    %v1126 = vadd.f32 %v989, %v1117
    %v1127 = vadd.f32 %v994, %v1117
    %v1128 = vadd.f32 %v999, %v1117
    %v1129 = vadd.f32 %v1004, %v1117
    %v1130 = vadd.f32 %v1009, %v1117
    %v1131 = vadd.f32 %v1014, %v1117
    %v1132 = vadd.f32 %v1019, %v1117
    %v1133 = vadd.f32 %v1024, %v1117
    %v1134 = vadd.f32 %v1029, %v1117
    %v1135 = vadd.f32 %v1034, %v1117
    %v1136 = vadd.f32 %v1039, %v1117
    %v1137 = vadd.f32 %v1044, %v1117
    %v1138 = vadd.f32 %v1049, %v1117
    %v1139 = vadd.f32 %v1054, %v1117
    %v1140 = vadd.f32 %v1059, %v1117
    %v1141 = vadd.f32 %v1064, %v1117
    %v1142 = vadd.f32 %v1069, %v1117
    %v1143 = vadd.f32 %v1074, %v1117
    %v1144 = vadd.f32 %v1079, %v1117
    %v1145 = vadd.f32 %v1084, %v1117
    %v1146 = vadd.f32 %v1089, %v1117
    %v1147 = vadd.f32 %v1094, %v1117
    %v1148 = vadd.f32 %v1099, %v1117
    %v1149 = vadd.f32 %v1104, %v1117
    %v1150 = vadd.f32 %v1109, %v1117
    %1151 = vst.msk [vmem:[%s5] sm:$0xff] %vm469, %v1119
    %1152 = vst.msk [vmem:[%s5 + $0x8] sm:$0xff] %vm469, %v1120
    %1153 = vst.msk [vmem:[%s5 + $0x10] sm:$0xff] %vm469, %v1121
    %1154 = vst.msk [vmem:[%s5 + $0x18] sm:$0xff] %vm469, %v1122
    %1155 = vst.msk [vmem:[%s5 + $0x20] sm:$0xff] %vm469, %v1123
    %1156 = vst.msk [vmem:[%s5 + $0x28] sm:$0xff] %vm469, %v1124
    %1157 = vst.msk [vmem:[%s5 + $0x30] sm:$0xff] %vm469, %v1125
    %1158 = vst.msk [vmem:[%s5 + $0x38] sm:$0xff] %vm469, %v1126
    %1159 = vst.msk [vmem:[%s5 + $0x40] sm:$0xff] %vm469, %v1127
    %1160 = vst.msk [vmem:[%s5 + $0x48] sm:$0xff] %vm469, %v1128
    %1161 = vst.msk [vmem:[%s5 + $0x50] sm:$0xff] %vm469, %v1129
    %1162 = vst.msk [vmem:[%s5 + $0x58] sm:$0xff] %vm469, %v1130
    %1163 = vst.msk [vmem:[%s5 + $0x60] sm:$0xff] %vm469, %v1131
    %1164 = vst.msk [vmem:[%s5 + $0x68] sm:$0xff] %vm469, %v1132
    %1165 = vst.msk [vmem:[%s5 + $0x70] sm:$0xff] %vm469, %v1133
    %1166 = vst.msk [vmem:[%s5 + $0x78] sm:$0xff] %vm469, %v1134
    %1167 = vst.msk [vmem:[%s5 + $0x80] sm:$0xff] %vm469, %v1135
    %1168 = vst.msk [vmem:[%s5 + $0x88] sm:$0xff] %vm469, %v1136
    %1169 = vst.msk [vmem:[%s5 + $0x90] sm:$0xff] %vm469, %v1137
    %1170 = vst.msk [vmem:[%s5 + $0x98] sm:$0xff] %vm469, %v1138
    %1171 = vst.msk [vmem:[%s5 + $0xa0] sm:$0xff] %vm469, %v1139
    %1172 = vst.msk [vmem:[%s5 + $0xa8] sm:$0xff] %vm469, %v1140
    %1173 = vst.msk [vmem:[%s5 + $0xb0] sm:$0xff] %vm469, %v1141
    %1174 = vst.msk [vmem:[%s5 + $0xb8] sm:$0xff] %vm469, %v1142
    %1175 = vst.msk [vmem:[%s5 + $0xc0] sm:$0xff] %vm469, %v1143
    %1176 = vst.msk [vmem:[%s5 + $0xc8] sm:$0xff] %vm469, %v1144
    %1177 = vst.msk [vmem:[%s5 + $0xd0] sm:$0xff] %vm469, %v1145
    %1178 = vst.msk [vmem:[%s5 + $0xd8] sm:$0xff] %vm469, %v1146
    %1179 = vst.msk [vmem:[%s5 + $0xe0] sm:$0xff] %vm469, %v1147
    %1180 = vst.msk [vmem:[%s5 + $0xe8] sm:$0xff] %vm469, %v1148
    %1181 = vst.msk [vmem:[%s5 + $0xf0] sm:$0xff] %vm469, %v1149
    %1182 = vst.msk [vmem:[%s5 + $0xf8] sm:$0xff] %vm469, %v1150
    // Predicated region
    $region26: #{tpu_custom_call.1} parent=1 // pred_check
      _
    $region27: #{tpu_custom_call.1} parent=1 // pred_check_branch
      %1184 = sbr.rel (0) target = $region29
    $region28: #{tpu_custom_call.1} parent=1 // pred_region
      _
    $region29: #{tpu_custom_call.1} parent=1 // pred_fallthru
      _
    // Predicated region
    $region30: #{tpu_custom_call.1} parent=1 // pred_check
      _
    $region31: #{tpu_custom_call.1} parent=1 // pred_check_branch
      %1186 = sbr.rel (0) target = $region33
    $region32: #{tpu_custom_call.1} parent=1 // pred_region
      _
    $region33: #{tpu_custom_call.1} parent=1 // pred_fallthru
      _
    %1187 = vsyncpa [#allocation3], 1

</llo_original>
